<compile_context>
chip_gen: v7x
topology: tpu7x:2x2x1
jax: 0.10.0
libtpu: 0.0.40
codegen_flags: <defaults>
</compile_context>

<pallas_src>
import jax
import jax.numpy as jnp
from jax.experimental import pallas as pl
from jax.experimental.pallas import tpu as pltpu


_COMPILER_PARAMS = pltpu.CompilerParams(
    dimension_semantics=("parallel",),
    vmem_limit_bytes=32 * 1024 * 1024,
)

# Below this many output elements the fixed pallas_call/pipeline overhead loses
# to a fused XLA broadcast; fall back to plain jnp unless forced.
_MIN_PALLAS_OUT_ELEMENTS = 1 << 15


def _round_up(x, m):
    return ((x + m - 1) // m) * m


def _choose_tile_rows(n_rows, bytes_per_out_row, bytes_per_x_row,
                      max_rows=8192, budget_bytes=16 * 1024 * 1024):
    """Largest row tile (multiple of 8, <= max_rows) fitting a double-buffered budget."""
    per_row = 2 * (bytes_per_out_row + bytes_per_x_row)   # double-buffered in+out
    tn = budget_bytes // per_row
    tn = min(int(tn), max_rows, _round_up(n_rows, 8))
    tn = max(8, (tn // 8) * 8)
    return int(tn)


# ---------------------------------------------------------------------------
# Kernels
# ---------------------------------------------------------------------------

def _linear1_broadcast_kernel(x_ref, w_ref, b_ref, o_ref):
    # x_ref: (TN, 1), w_ref: (1, H), b_ref: (1, H), o_ref: (TN, H).
    # Pure VPU broadcast multiply-add (K == 1); deliberately off the MXU.
    x = x_ref[...].astype(jnp.float32)
    w = w_ref[...].astype(jnp.float32)
    b = b_ref[...].astype(jnp.float32)
    o_ref[...] = (x * w + b).astype(o_ref.dtype)


def _linear1_packed_kernel(x_ref, s_ref, b_ref, o_ref):
    # x_ref: (TN, r_pad), s_ref: (r_pad, 128) block-diagonal weight,
    # b_ref: (1, 128) tiled bias, o_ref: (TN, 128) lane-packed output.
    # One tiny-K matmul packs r logical output rows per 128-lane row; stores
    # are fully dense unmasked vst and HBM writes carry zero padding bytes.
    x = x_ref[...].astype(jnp.float32)
    s = s_ref[...].astype(jnp.float32)
    b = b_ref[...].astype(jnp.float32)
    acc = jnp.dot(x, s, preferred_element_type=jnp.float32,
                  precision=jax.lax.Precision.HIGHEST)
    o_ref[...] = (acc + b).astype(o_ref.dtype)


# ---------------------------------------------------------------------------
# Wrapper paths
# ---------------------------------------------------------------------------

def _general_path(x2d, weight, bias, out_dtype):
    """Unpadded (N, H) output; masked stores if H % 128 != 0, but no extra HBM bytes."""
    n = x2d.shape[0]
    h = weight.shape[0]
    w_row = weight.reshape(1, h)
    b_row = bias.reshape(1, h)

    out_itemsize = jnp.dtype(out_dtype).itemsize
    tn = _choose_tile_rows(
        n,
        bytes_per_out_row=_round_up(h, 128) * out_itemsize,  # VMEM lane padding
        bytes_per_x_row=128 * 4,                              # (tn,1) pads to 128 lanes
    )
    num_tiles = pl.cdiv(n, tn)
    n_pad = num_tiles * tn
    if n_pad != n:
        x2d = jnp.pad(x2d, ((0, n_pad - n), (0, 0)))

    out = pl.pallas_call(
        _linear1_broadcast_kernel,
        out_shape=jax.ShapeDtypeStruct((n_pad, h), out_dtype),
        grid=(num_tiles,),
        in_specs=[
            pl.BlockSpec((tn, 1), lambda i: (i, 0)),     # x rows, tiled
            pl.BlockSpec((1, h), lambda i: (0, 0)),      # weight row, resident
            pl.BlockSpec((1, h), lambda i: (0, 0)),      # bias row, resident
        ],
        out_specs=pl.BlockSpec((tn, h), lambda i: (i, 0)),
        compiler_params=_COMPILER_PARAMS,
    )(x2d, w_row, b_row)

    if n_pad != n:
        out = out[:n]
    return out


def _packed_path(x_flat, weight, bias, out_dtype):
    """Lane-packed output for H dividing 128: dense 128-lane stores, no padded bytes."""
    n = x_flat.shape[0]
    h = weight.shape[0]
    r = 128 // h                 # logical output rows per packed 128-lane row
    r_pad = max(r, 8)            # pad contraction dim up to a full sublane group

    n_pack = pl.cdiv(n, r)
    out_itemsize = jnp.dtype(out_dtype).itemsize
    tn = _choose_tile_rows(
        n_pack,
        bytes_per_out_row=128 * out_itemsize,
        bytes_per_x_row=128 * 4,                              # lane-padded in VMEM
    )
    num_tiles = pl.cdiv(n_pack, tn)
    n_pack_pad = num_tiles * tn
    n_rows_pad = n_pack_pad * r

    if n_rows_pad != n:
        x_flat = jnp.pad(x_flat, (0, n_rows_pad - n))
    x_pack = x_flat.reshape(n_pack_pad, r)
    if r_pad != r:
        x_pack = jnp.pad(x_pack, ((0, 0), (0, r_pad - r)))

    # Block-diagonal weight: S[i, i*h + k] = W[k]; padded rows are zero.
    w_flat = weight.reshape(h).astype(jnp.float32)
    s = jnp.kron(jnp.eye(r, dtype=jnp.float32), w_flat[None, :])  # (r, 128)
    if r_pad != r:
        s = jnp.pad(s, ((0, r_pad - r), (0, 0)))
    b_row = jnp.tile(bias.reshape(1, h).astype(jnp.float32), (1, r))  # (1, 128)

    out = pl.pallas_call(
        _linear1_packed_kernel,
        out_shape=jax.ShapeDtypeStruct((n_pack_pad, 128), out_dtype),
        grid=(num_tiles,),
        in_specs=[
            pl.BlockSpec((tn, r_pad), lambda i: (i, 0)),     # packed x rows, tiled
            pl.BlockSpec((r_pad, 128), lambda i: (0, 0)),    # weight matrix, resident
            pl.BlockSpec((1, 128), lambda i: (0, 0)),        # tiled bias, resident
        ],
        out_specs=pl.BlockSpec((tn, 128), lambda i: (i, 0)),
        compiler_params=_COMPILER_PARAMS,
    )(x_pack, s, b_row)

    # Row-major (n_pack_pad, 128) is bit-identical to (n_rows_pad, h): free reshape.
    out = out.reshape(n_rows_pad, h)
    if n_rows_pad != n:
        out = out[:n]            # only pay the slice copy when padding was added
    return out


def distance_to_goal_encoder(rtgs, weight, bias, *, out_dtype=None,
                             force_pallas=False):
    """Pallas equivalent of nn.Linear(1, H) applied to RtGs of shape (..., 1).

    Args:
      rtgs:   array of shape (..., 1)
      weight: array of shape (H, 1)   (PyTorch Linear weight layout)
      bias:   array of shape (H,)
      out_dtype: optional output dtype (e.g. jnp.bfloat16 to halve HBM writes);
        defaults to the promoted x/weight/bias dtype.
      force_pallas: bypass the small-problem jnp fallback (used for testing).
    Returns:
      array of shape (..., H)
    """
    assert rtgs.shape[-1] == 1, "DistanceToGoalEncoder expects last dim == 1"
    lead_shape = rtgs.shape[:-1]
    h = weight.shape[0]
    if out_dtype is None:
        out_dtype = jnp.result_type(rtgs.dtype, weight.dtype, bias.dtype)

    n = 1
    for d in lead_shape:
        n *= int(d)

    # TODO(synk): fuse this broadcast into the consumer kernel (DT embedding sum)
    # so the (B, T, H) result never round-trips HBM at all.
    if not force_pallas and n * h < _MIN_PALLAS_OUT_ELEMENTS:
        out = (rtgs.reshape(-1, 1).astype(jnp.float32)
               * weight.reshape(1, h).astype(jnp.float32)
               + bias.reshape(1, h).astype(jnp.float32))
        return out.astype(out_dtype).reshape(*lead_shape, h)

    if h < 128 and 128 % h == 0:
        out = _packed_path(rtgs.reshape(-1), weight, bias, out_dtype)
    else:
        out = _general_path(rtgs.reshape(-1, 1), weight, bias, out_dtype)
    return out.reshape(*lead_shape, h)


def _reference(rtgs, weight, bias):
    # Plain-JAX reference of nn.Linear(1, H): y = x @ W^T + b
    return jnp.einsum("...i,hi->...h", rtgs, weight) + bias


if __name__ == "__main__":
    key = jax.random.PRNGKey(0)
    k_x, k_w, k_b, k_w2, k_b2 = jax.random.split(key, 5)

    batch, seq, hidden = 2, 8, 32

    # Example input: returns-to-go, shape (B, T, 1)
    rtgs = jax.random.normal(k_x, (batch, seq, 1), dtype=jnp.float32)

    # Deterministic params mimicking PyTorch Linear default init (fan_in = 1).
    weight = jax.random.uniform(k_w, (hidden, 1), minval=-1.0, maxval=1.0,
                                dtype=jnp.float32)
    bias = jax.random.uniform(k_b, (hidden,), minval=-1.0, maxval=1.0,
                              dtype=jnp.float32)

    # Lane-packed path (H=32 divides 128).
    out = distance_to_goal_encoder(rtgs, weight, bias, force_pallas=True)
    out = jax.block_until_ready(out)
    ref = _reference(rtgs, weight, bias)
    assert out.shape == (batch, seq, hidden)
    assert jnp.allclose(out, ref, atol=1e-5, rtol=1e-5)

    # General (unpadded, masked-store) path: H does not divide 128.
    hidden2 = 200
    weight2 = jax.random.uniform(k_w2, (hidden2, 1), minval=-1.0, maxval=1.0,
                                 dtype=jnp.float32)
    bias2 = jax.random.uniform(k_b2, (hidden2,), minval=-1.0, maxval=1.0,
                               dtype=jnp.float32)
    out2 = distance_to_goal_encoder(rtgs, weight2, bias2, force_pallas=True)
    out2 = jax.block_until_ready(out2)
    ref2 = _reference(rtgs, weight2, bias2)
    assert out2.shape == (batch, seq, hidden2)
    assert jnp.allclose(out2, ref2, atol=1e-5, rtol=1e-5)

    print("KERNEL_OK")
</pallas_src>

<mosaic_0001>
module attributes {stable_mosaic.version = 11 : i64} {
  func.func @_linear1_packed_kernel(%arg0: i32, %arg1: memref<8x8xf32, #tpu.memory_space<vmem>>, %arg2: memref<8x128xf32, #tpu.memory_space<vmem>>, %arg3: memref<1x128xf32, #tpu.memory_space<vmem>>, %arg4: memref<8x128xf32, #tpu.memory_space<vmem>>) attributes {dimension_semantics = [#tpu.dimension_semantics<parallel>], iteration_bounds = array<i64: 1>, scalar_prefetch = 0 : i64, scratch_operands = 0 : i64, tpu.core_type = #tpu.core_type<tc>, window_params = [{transform_indices = @transform_0, window_bounds = array<i64: 8, 8>}, {pipeline_mode = #tpu.pipeline_mode<synchronous>, transform_indices = @transform_1, window_bounds = array<i64: 8, 128>}, {pipeline_mode = #tpu.pipeline_mode<synchronous>, transform_indices = @transform_2, window_bounds = array<i64: 1, 128>}, {transform_indices = @transform_3, window_bounds = array<i64: 8, 128>}]} {
    %c0 = arith.constant 0 : index
    %c0_0 = arith.constant 0 : index
    %0 = vector.load %arg1[%c0, %c0_0] : memref<8x8xf32, #tpu.memory_space<vmem>>, vector<8x8xf32>
    %c0_1 = arith.constant 0 : index
    %c0_2 = arith.constant 0 : index
    %1 = vector.load %arg2[%c0_1, %c0_2] : memref<8x128xf32, #tpu.memory_space<vmem>>, vector<8x128xf32>
    %c0_3 = arith.constant 0 : index
    %c0_4 = arith.constant 0 : index
    %2 = vector.load %arg3[%c0_3, %c0_4] : memref<1x128xf32, #tpu.memory_space<vmem>>, vector<1x128xf32>
    %cst = arith.constant dense<0.000000e+00> : vector<8x128xf32>
    %3 = tpu.matmul %0, %1, %cst {dimension_numbers = #tpu.dot_dimension_numbers<[1], [0], [0], [1], [0, 0, 1, 1], [], []>, precision = #tpu.contract_precision<fp32>} : vector<8x8xf32>, vector<8x128xf32>, vector<8x128xf32> -> vector<8x128xf32>
    %4 = vector.broadcast %2 : vector<1x128xf32> to vector<8x128xf32>
    %5 = arith.addf %3, %4 : vector<8x128xf32>
    %c0_5 = arith.constant 0 : index
    %c0_6 = arith.constant 0 : index
    %6 = vector.load %arg4[%c0_5, %c0_6] : memref<8x128xf32, #tpu.memory_space<vmem>>, vector<8x128xf32>
    tpu.vector_store %arg4[%c0_5, %c0_6], %5 {strides = array<i32>} : memref<8x128xf32, #tpu.memory_space<vmem>>, vector<8x128xf32>,
    return
  }
  func.func @transform_0(%arg0: i32) -> (i32, i32) {
    %c0_i32 = arith.constant 0 : i32
    %c0_i32_0 = arith.constant 0 : i32
    return %arg0, %c0_i32 : i32, i32
  }
  func.func @transform_1(%arg0: i32) -> (i32, i32) {
    %c0_i32 = arith.constant 0 : i32
    %c0_i32_0 = arith.constant 0 : i32
    %c0_i32_1 = arith.constant 0 : i32
    return %c0_i32, %c0_i32_0 : i32, i32
  }
  func.func @transform_2(%arg0: i32) -> (i32, i32) {
    %c0_i32 = arith.constant 0 : i32
    %c0_i32_0 = arith.constant 0 : i32
    %c0_i32_1 = arith.constant 0 : i32
    return %c0_i32, %c0_i32_0 : i32, i32
  }
  func.func @transform_3(%arg0: i32) -> (i32, i32) {
    %c0_i32 = arith.constant 0 : i32
    %c0_i32_0 = arith.constant 0 : i32
    return %arg0, %c0_i32 : i32, i32
  }
}

</mosaic_0001>

<llo_original>
// kernel: tpu_custom_call.1
$region0: #{tpu_custom_call.1}
  #allocation0 [shape = 'u32[]', space=smem, size = 0x4, offset = 0x4, fixed_abs, tag = 'smem constant byte address 0x4 - core index']
  #allocation1 [shape = 'u32[144,128]{1,0:T(1,128)}', space=vmem, size = 0x12000, scoped, tag = 'internal scratch']
  %s0 = inlined_call_operand.hbm [shape: f32[8,8], index: 0, kind: input, shape index: {}]
  %s1 = inlined_call_operand.hbm [shape: f32[8,128], index: 1, kind: input, shape index: {}]
  %s2 = inlined_call_operand.vmem [shape: f32[1,128], index: 2, kind: input, shape index: {}]
  %s3 = inlined_call_operand.hbm [shape: f32[8,128], index: 3, kind: output, shape index: {}]
  %s4 = sld [smem:[#allocation0]]
  $region30: #{tpu_custom_call.1} parent=0
    _
  %s6 = ssub.s32 1, %s4
  %s7 = scalar_select 0, %s6, %s4
  $region1: #{tpu_custom_call.1} parent=0
    #allocation2 [shape = 'u8[4096]{0}', space=vmem, size = 0x1000, scoped, tag = 'input window, operand 0, single buffered']
    #allocation3 [shape = 's32[1]{0}', space=sflag, size = 0x4, scoped, tag = 'scoped memory for tpu_custom_call.1']
    #allocation4 [shape = 's32[1]{0}', space=sflag, size = 0x4, scoped, tag = 'scoped memory for tpu_custom_call.1']
    #allocation5 [shape = 'u8[4096]{0}', space=vmem, size = 0x1000, scoped, tag = 'input window, operand 1, single buffered']
    #allocation6 [shape = 's32[1]{0}', space=sflag, size = 0x4, scoped, tag = 'scoped memory for tpu_custom_call.1']
    #allocation7 [shape = 'u8[4096]{0}', space=vmem, size = 0x1000, scoped, tag = 'output window, operand 0, single buffered']
    %8 = vsyncpa [#allocation3], 0
    %9 = vsyncpa [#allocation6], 0
    %10 = vsyncpa [#allocation4], 0
    // Predicated region
    $region2: #{tpu_custom_call.1} parent=1 // pred_check
      _
    $region3: #{tpu_custom_call.1} parent=1 // pred_check_branch
      %12 = sbr.rel (0) target = $region5
    $region4: #{tpu_custom_call.1} parent=1 // pred_region
      %s14 = ssub.s32 128, 128
      %15 = vsyncadd [#allocation3], %s14
      %s17 = sshll.u32 [#allocation2], 4
      %s18 = int_to_ptr.vmem [resolvable:$true] %s17
      %20 = dma.hbm_to_vmem [thread:$0]  %s0, 128, %s18, [#allocation3]
    $region5: #{tpu_custom_call.1} parent=1 // pred_fallthru
      _
    // Predicated region
    $region6: #{tpu_custom_call.1} parent=1 // pred_check
      _
    $region7: #{tpu_custom_call.1} parent=1 // pred_check_branch
      %22 = sbr.rel (0) target = $region9
    $region8: #{tpu_custom_call.1} parent=1 // pred_region
      %s24 = ssub.s32 128, 128
      %25 = vsyncadd [#allocation6], %s24
      %s27 = sshll.u32 [#allocation5], 4
      %s28 = int_to_ptr.vmem [resolvable:$true] %s27
      %30 = dma.hbm_to_vmem [thread:$0]  %s1, 128, %s28, [#allocation6]
    $region9: #{tpu_custom_call.1} parent=1 // pred_fallthru
      _
    // Predicated region
    $region10: #{tpu_custom_call.1} parent=1 // pred_check
      _
    $region11: #{tpu_custom_call.1} parent=1 // pred_check_branch
      %32 = sbr.rel (0) target = $region13
    $region12: #{tpu_custom_call.1} parent=1 // pred_region
      _
    $region13: #{tpu_custom_call.1} parent=1 // pred_fallthru
      _
    // Predicated region
    $region14: #{tpu_custom_call.1} parent=1 // pred_check
      _
    $region15: #{tpu_custom_call.1} parent=1 // pred_check_branch
      %34 = sbr.rel (0) target = $region17
    $region16: #{tpu_custom_call.1} parent=1 // pred_region
      %35 = dma.done [#allocation3], 128
    $region17: #{tpu_custom_call.1} parent=1 // pred_fallthru
      _
    // Predicated region
    $region18: #{tpu_custom_call.1} parent=1 // pred_check
      _
    $region19: #{tpu_custom_call.1} parent=1 // pred_check_branch
      %37 = sbr.rel (0) target = $region21
    $region20: #{tpu_custom_call.1} parent=1 // pred_region
      %38 = dma.done [#allocation6], 128
    $region21: #{tpu_custom_call.1} parent=1 // pred_fallthru
      _
    %v39 = vld [vmem:[#allocation2] sm:$0xff]
    %v40 = vld [vmem:[#allocation5] sm:$0xff]
    %v41 = vld [vmem:[%s2] sm:$0x1]
    %v43 = vlaneseq
    %v44 = vshrl.u32 %v43, 7
    %v45 = vsub.s32 0, %v44
    %v46 = vrot.slane %v41, %v45
    %vm48 = vcmask 64512
    %v50 = vsel %vm48, %v39, 0
    %52 = vmatprep.subr.mxu0 0.0
    %v53 = vand.u32 %v40, 4294901760
    %54 = vmatpush1.msra.mxu0 %v53
    %55 = vmatprep.subr.mxu0 0.0
    %56 = vmatpush1.msra.mxu0 0.0
    %57 = vmatprep.subr.mxu0 0.0
    %58 = vmatpush1.msra.mxu0 0.0
    %59 = vmatprep.subr.mxu0 0.0
    %60 = vmatpush1.msra.mxu0 0.0
    %61 = vmatprep.subr.mxu0 0.0
    %62 = vmatpush1.msra.mxu0 0.0
    %63 = vmatprep.subr.mxu0 0.0
    %64 = vmatpush1.msra.mxu0 0.0
    %65 = vmatprep.subr.mxu0 0.0
    %66 = vmatpush1.msra.mxu0 0.0
    %67 = vmatprep.subr.mxu0 0.0
    %68 = vmatpush1.msra.mxu0 0.0
    %69 = vmatprep.subr.mxu0 0.0
    %70 = vmatpush1.msra.mxu0 0.0
    %71 = vmatprep.subr.mxu0 0.0
    %72 = vmatpush1.msra.mxu0 0.0
    %73 = vmatprep.subr.mxu0 0.0
    %74 = vmatpush1.msra.mxu0 0.0
    %75 = vmatprep.subr.mxu0 0.0
    %76 = vmatpush1.msra.mxu0 0.0
    %77 = vmatprep.subr.mxu0 0.0
    %78 = vmatpush1.msra.mxu0 0.0
    %79 = vmatprep.subr.mxu0 0.0
    %80 = vmatpush1.msra.mxu0 0.0
    %81 = vmatprep.subr.mxu0 0.0
    %82 = vmatpush1.msra.mxu0 0.0
    %83 = vmatprep.subr.mxu0 0.0
    %84 = vmatpush1.msra.mxu0 0.0
    %85 = vmatprep.subr.mxu0 0.0
    %86 = vmatpush1.msra.mxu0 0.0
    %87 = vmatprep.subr.mxu0 0.0
    %88 = vmatpush1.msra.mxu0 0.0
    %89 = vmatprep.subr.mxu0 0.0
    %90 = vmatpush1.msra.mxu0 0.0
    %91 = vmatprep.subr.mxu0 0.0
    %92 = vmatpush1.msra.mxu0 0.0
    %93 = vmatprep.subr.mxu0 0.0
    %94 = vmatpush1.msra.mxu0 0.0
    %95 = vmatprep.subr.mxu0 0.0
    %96 = vmatpush1.msra.mxu0 0.0
    %97 = vmatprep.subr.mxu0 0.0
    %98 = vmatpush1.msra.mxu0 0.0
    %99 = vmatprep.subr.mxu0 0.0
    %100 = vmatpush1.msra.mxu0 0.0
    %101 = vmatprep.subr.mxu0 0.0
    %102 = vmatpush1.msra.mxu0 0.0
    %103 = vmatprep.subr.mxu0 0.0
    %104 = vmatpush1.msra.mxu0 0.0
    %105 = vmatprep.subr.mxu0 0.0
    %106 = vmatpush1.msra.mxu0 0.0
    %107 = vmatprep.subr.mxu0 0.0
    %108 = vmatpush1.msra.mxu0 0.0
    %109 = vmatprep.subr.mxu0 0.0
    %110 = vmatpush1.msra.mxu0 0.0
    %111 = vmatprep.subr.mxu0 0.0
    %112 = vmatpush1.msra.mxu0 0.0
    %113 = vmatprep.subr.mxu0 0.0
    %114 = vmatpush1.msra.mxu0 0.0
    %115 = vmatprep.subr.mxu0 0.0
    %116 = vmatpush1.msra.mxu0 0.0
    %117 = vmatprep.mubr.f32.mxu0 0.0
    %v118 = vand.u32 %v50, 4294901760
    %v119 = vsub.f32 %v50, %v118
    %v120 = vand.u32 %v119, 4294901760
    %v121 = vsub.f32 %v119, %v120
    %v122 = vand.u32 %v121, 4294901760
    %123 = vmatmul.mubr.f32.gmra.mrb[0].mxu0 %v122
    %v124 = vpop.f32.mrb[0].mxu0
    %v125 = vadd.f32 %v46, %v124
    %v126 = vpop.f32.mrb[0].mxu0
    %127 = vdwg.mxu0
    %128 = vmatprep.subr.mxu0 0.0
    %v129 = vand.u32 %v40, 4294901760
    %v130 = vsub.f32 %v40, %v129
    %v131 = vand.u32 %v130, 4294901760
    %v132 = vsub.f32 %v130, %v131
    %v133 = vand.u32 %v132, 4294901760
    %134 = vmatpush1.msra.mxu0 %v133
    %135 = vmatprep.subr.mxu0 0.0
    %136 = vmatpush1.msra.mxu0 0.0
    %137 = vmatprep.subr.mxu0 0.0
    %138 = vmatpush1.msra.mxu0 0.0
    %139 = vmatprep.subr.mxu0 0.0
    %140 = vmatpush1.msra.mxu0 0.0
    %141 = vmatprep.subr.mxu0 0.0
    %142 = vmatpush1.msra.mxu0 0.0
    %143 = vmatprep.subr.mxu0 0.0
    %144 = vmatpush1.msra.mxu0 0.0
    %145 = vmatprep.subr.mxu0 0.0
    %146 = vmatpush1.msra.mxu0 0.0
    %147 = vmatprep.subr.mxu0 0.0
    %148 = vmatpush1.msra.mxu0 0.0
    %149 = vmatprep.subr.mxu0 0.0
    %150 = vmatpush1.msra.mxu0 0.0
    %151 = vmatprep.subr.mxu0 0.0
    %152 = vmatpush1.msra.mxu0 0.0
    %153 = vmatprep.subr.mxu0 0.0
    %154 = vmatpush1.msra.mxu0 0.0
    %155 = vmatprep.subr.mxu0 0.0
    %156 = vmatpush1.msra.mxu0 0.0
    %157 = vmatprep.subr.mxu0 0.0
    %158 = vmatpush1.msra.mxu0 0.0
    %159 = vmatprep.subr.mxu0 0.0
    %160 = vmatpush1.msra.mxu0 0.0
    %161 = vmatprep.subr.mxu0 0.0
    %162 = vmatpush1.msra.mxu0 0.0
    %163 = vmatprep.subr.mxu0 0.0
    %164 = vmatpush1.msra.mxu0 0.0
    %165 = vmatprep.subr.mxu0 0.0
    %166 = vmatpush1.msra.mxu0 0.0
    %167 = vmatprep.subr.mxu0 0.0
    %168 = vmatpush1.msra.mxu0 0.0
    %169 = vmatprep.subr.mxu0 0.0
    %170 = vmatpush1.msra.mxu0 0.0
    %171 = vmatprep.subr.mxu0 0.0
    %172 = vmatpush1.msra.mxu0 0.0
    %173 = vmatprep.subr.mxu0 0.0
    %174 = vmatpush1.msra.mxu0 0.0
    %175 = vmatprep.subr.mxu0 0.0
    %176 = vmatpush1.msra.mxu0 0.0
    %177 = vmatprep.subr.mxu0 0.0
    %178 = vmatpush1.msra.mxu0 0.0
    %179 = vmatprep.subr.mxu0 0.0
    %180 = vmatpush1.msra.mxu0 0.0
    %181 = vmatprep.subr.mxu0 0.0
    %182 = vmatpush1.msra.mxu0 0.0
    %183 = vmatprep.subr.mxu0 0.0
    %184 = vmatpush1.msra.mxu0 0.0
    %185 = vmatprep.subr.mxu0 0.0
    %186 = vmatpush1.msra.mxu0 0.0
    %187 = vmatprep.subr.mxu0 0.0
    %188 = vmatpush1.msra.mxu0 0.0
    %189 = vmatprep.subr.mxu0 0.0
    %190 = vmatpush1.msra.mxu0 0.0
    %191 = vmatprep.subr.mxu0 0.0
    %192 = vmatpush1.msra.mxu0 0.0
    %193 = vmatprep.subr.mxu0 0.0
    %194 = vmatpush1.msra.mxu0 0.0
    %195 = vmatprep.subr.mxu0 0.0
    %196 = vmatpush1.msra.mxu0 0.0
    %197 = vmatprep.mubr.f32.mxu0 0.0
    %v198 = vand.u32 %v50, 4294901760
    %199 = vmatmul.mubr.f32.gmra.mrb[0].mxu0 %v198
    %v200 = vpop.f32.mrb[0].mxu0
    %v201 = vadd.f32 %v125, %v200
    %v202 = vpop.f32.mrb[0].mxu0
    %203 = vdwg.mxu0
    %204 = vmatprep.subr.mxu0 0.0
    %v205 = vand.u32 %v40, 4294901760
    %v206 = vsub.f32 %v40, %v205
    %207 = vmatpush1.msra.mxu0 %v206
    %208 = vmatprep.subr.mxu0 0.0
    %209 = vmatpush1.msra.mxu0 0.0
    %210 = vmatprep.subr.mxu0 0.0
    %211 = vmatpush1.msra.mxu0 0.0
    %212 = vmatprep.subr.mxu0 0.0
    %213 = vmatpush1.msra.mxu0 0.0
    %214 = vmatprep.subr.mxu0 0.0
    %215 = vmatpush1.msra.mxu0 0.0
    %216 = vmatprep.subr.mxu0 0.0
    %217 = vmatpush1.msra.mxu0 0.0
    %218 = vmatprep.subr.mxu0 0.0
    %219 = vmatpush1.msra.mxu0 0.0
    %220 = vmatprep.subr.mxu0 0.0
    %221 = vmatpush1.msra.mxu0 0.0
    %222 = vmatprep.subr.mxu0 0.0
    %223 = vmatpush1.msra.mxu0 0.0
    %224 = vmatprep.subr.mxu0 0.0
    %225 = vmatpush1.msra.mxu0 0.0
    %226 = vmatprep.subr.mxu0 0.0
    %227 = vmatpush1.msra.mxu0 0.0
    %228 = vmatprep.subr.mxu0 0.0
    %229 = vmatpush1.msra.mxu0 0.0
    %230 = vmatprep.subr.mxu0 0.0
    %231 = vmatpush1.msra.mxu0 0.0
    %232 = vmatprep.subr.mxu0 0.0
    %233 = vmatpush1.msra.mxu0 0.0
    %234 = vmatprep.subr.mxu0 0.0
    %235 = vmatpush1.msra.mxu0 0.0
    %236 = vmatprep.subr.mxu0 0.0
    %237 = vmatpush1.msra.mxu0 0.0
    %238 = vmatprep.subr.mxu0 0.0
    %239 = vmatpush1.msra.mxu0 0.0
    %240 = vmatprep.subr.mxu0 0.0
    %241 = vmatpush1.msra.mxu0 0.0
    %242 = vmatprep.subr.mxu0 0.0
    %243 = vmatpush1.msra.mxu0 0.0
    %244 = vmatprep.subr.mxu0 0.0
    %245 = vmatpush1.msra.mxu0 0.0
    %246 = vmatprep.subr.mxu0 0.0
    %247 = vmatpush1.msra.mxu0 0.0
    %248 = vmatprep.subr.mxu0 0.0
    %249 = vmatpush1.msra.mxu0 0.0
    %250 = vmatprep.subr.mxu0 0.0
    %251 = vmatpush1.msra.mxu0 0.0
    %252 = vmatprep.subr.mxu0 0.0
    %253 = vmatpush1.msra.mxu0 0.0
    %254 = vmatprep.subr.mxu0 0.0
    %255 = vmatpush1.msra.mxu0 0.0
    %256 = vmatprep.subr.mxu0 0.0
    %257 = vmatpush1.msra.mxu0 0.0
    %258 = vmatprep.subr.mxu0 0.0
    %259 = vmatpush1.msra.mxu0 0.0
    %260 = vmatprep.subr.mxu0 0.0
    %261 = vmatpush1.msra.mxu0 0.0
    %262 = vmatprep.subr.mxu0 0.0
    %263 = vmatpush1.msra.mxu0 0.0
    %264 = vmatprep.subr.mxu0 0.0
    %265 = vmatpush1.msra.mxu0 0.0
    %266 = vmatprep.subr.mxu0 0.0
    %267 = vmatpush1.msra.mxu0 0.0
    %268 = vmatprep.subr.mxu0 0.0
    %269 = vmatpush1.msra.mxu0 0.0
    %270 = vmatprep.mubr.f32.mxu0 0.0
    %v271 = vand.u32 %v50, 4294901760
    %v272 = vsub.f32 %v50, %v271
    %273 = vmatmul.mubr.f32.gmra.mrb[0].mxu0 %v272
    %v274 = vpop.f32.mrb[0].mxu0
    %v275 = vadd.f32 %v201, %v274
    %v276 = vpop.f32.mrb[0].mxu0
    %277 = vdwg.mxu0
    %278 = vmatprep.subr.mxu0 0.0
    %v279 = vand.u32 %v40, 4294901760
    %280 = vmatpush1.msra.mxu0 %v279
    %281 = vmatprep.subr.mxu0 0.0
    %282 = vmatpush1.msra.mxu0 0.0
    %283 = vmatprep.subr.mxu0 0.0
    %284 = vmatpush1.msra.mxu0 0.0
    %285 = vmatprep.subr.mxu0 0.0
    %286 = vmatpush1.msra.mxu0 0.0
    %287 = vmatprep.subr.mxu0 0.0
    %288 = vmatpush1.msra.mxu0 0.0
    %289 = vmatprep.subr.mxu0 0.0
    %290 = vmatpush1.msra.mxu0 0.0
    %291 = vmatprep.subr.mxu0 0.0
    %292 = vmatpush1.msra.mxu0 0.0
    %293 = vmatprep.subr.mxu0 0.0
    %294 = vmatpush1.msra.mxu0 0.0
    %295 = vmatprep.subr.mxu0 0.0
    %296 = vmatpush1.msra.mxu0 0.0
    %297 = vmatprep.subr.mxu0 0.0
    %298 = vmatpush1.msra.mxu0 0.0
    %299 = vmatprep.subr.mxu0 0.0
    %300 = vmatpush1.msra.mxu0 0.0
    %301 = vmatprep.subr.mxu0 0.0
    %302 = vmatpush1.msra.mxu0 0.0
    %303 = vmatprep.subr.mxu0 0.0
    %304 = vmatpush1.msra.mxu0 0.0
    %305 = vmatprep.subr.mxu0 0.0
    %306 = vmatpush1.msra.mxu0 0.0
    %307 = vmatprep.subr.mxu0 0.0
    %308 = vmatpush1.msra.mxu0 0.0
    %309 = vmatprep.subr.mxu0 0.0
    %310 = vmatpush1.msra.mxu0 0.0
    %311 = vmatprep.subr.mxu0 0.0
    %312 = vmatpush1.msra.mxu0 0.0
    %313 = vmatprep.subr.mxu0 0.0
    %314 = vmatpush1.msra.mxu0 0.0
    %315 = vmatprep.subr.mxu0 0.0
    %316 = vmatpush1.msra.mxu0 0.0
    %317 = vmatprep.subr.mxu0 0.0
    %318 = vmatpush1.msra.mxu0 0.0
    %319 = vmatprep.subr.mxu0 0.0
    %320 = vmatpush1.msra.mxu0 0.0
    %321 = vmatprep.subr.mxu0 0.0
    %322 = vmatpush1.msra.mxu0 0.0
    %323 = vmatprep.subr.mxu0 0.0
    %324 = vmatpush1.msra.mxu0 0.0
    %325 = vmatprep.subr.mxu0 0.0
    %326 = vmatpush1.msra.mxu0 0.0
    %327 = vmatprep.subr.mxu0 0.0
    %328 = vmatpush1.msra.mxu0 0.0
    %329 = vmatprep.subr.mxu0 0.0
    %330 = vmatpush1.msra.mxu0 0.0
    %331 = vmatprep.subr.mxu0 0.0
    %332 = vmatpush1.msra.mxu0 0.0
    %333 = vmatprep.subr.mxu0 0.0
    %334 = vmatpush1.msra.mxu0 0.0
    %335 = vmatprep.subr.mxu0 0.0
    %336 = vmatpush1.msra.mxu0 0.0
    %337 = vmatprep.subr.mxu0 0.0
    %338 = vmatpush1.msra.mxu0 0.0
    %339 = vmatprep.subr.mxu0 0.0
    %340 = vmatpush1.msra.mxu0 0.0
    %341 = vmatprep.subr.mxu0 0.0
    %342 = vmatpush1.msra.mxu0 0.0
    %343 = vmatprep.mubr.f32.mxu0 0.0
    %v344 = vand.u32 %v50, 4294901760
    %v345 = vsub.f32 %v50, %v344
    %v346 = vand.u32 %v345, 4294901760
    %347 = vmatmul.mubr.f32.gmra.mrb[0].mxu0 %v346
    %v348 = vpop.f32.mrb[0].mxu0
    %v349 = vadd.f32 %v275, %v348
    %v350 = vpop.f32.mrb[0].mxu0
    %351 = vdwg.mxu0
    %352 = vmatprep.subr.mxu0 0.0
    %v353 = vand.u32 %v40, 4294901760
    %v354 = vsub.f32 %v40, %v353
    %v355 = vand.u32 %v354, 4294901760
    %356 = vmatpush1.msra.mxu0 %v355
    %357 = vmatprep.subr.mxu0 0.0
    %358 = vmatpush1.msra.mxu0 0.0
    %359 = vmatprep.subr.mxu0 0.0
    %360 = vmatpush1.msra.mxu0 0.0
    %361 = vmatprep.subr.mxu0 0.0
    %362 = vmatpush1.msra.mxu0 0.0
    %363 = vmatprep.subr.mxu0 0.0
    %364 = vmatpush1.msra.mxu0 0.0
    %365 = vmatprep.subr.mxu0 0.0
    %366 = vmatpush1.msra.mxu0 0.0
    %367 = vmatprep.subr.mxu0 0.0
    %368 = vmatpush1.msra.mxu0 0.0
    %369 = vmatprep.subr.mxu0 0.0
    %370 = vmatpush1.msra.mxu0 0.0
    %371 = vmatprep.subr.mxu0 0.0
    %372 = vmatpush1.msra.mxu0 0.0
    %373 = vmatprep.subr.mxu0 0.0
    %374 = vmatpush1.msra.mxu0 0.0
    %375 = vmatprep.subr.mxu0 0.0
    %376 = vmatpush1.msra.mxu0 0.0
    %377 = vmatprep.subr.mxu0 0.0
    %378 = vmatpush1.msra.mxu0 0.0
    %379 = vmatprep.subr.mxu0 0.0
    %380 = vmatpush1.msra.mxu0 0.0
    %381 = vmatprep.subr.mxu0 0.0
    %382 = vmatpush1.msra.mxu0 0.0
    %383 = vmatprep.subr.mxu0 0.0
    %384 = vmatpush1.msra.mxu0 0.0
    %385 = vmatprep.subr.mxu0 0.0
    %386 = vmatpush1.msra.mxu0 0.0
    %387 = vmatprep.subr.mxu0 0.0
    %388 = vmatpush1.msra.mxu0 0.0
    %389 = vmatprep.subr.mxu0 0.0
    %390 = vmatpush1.msra.mxu0 0.0
    %391 = vmatprep.subr.mxu0 0.0
    %392 = vmatpush1.msra.mxu0 0.0
    %393 = vmatprep.subr.mxu0 0.0
    %394 = vmatpush1.msra.mxu0 0.0
    %395 = vmatprep.subr.mxu0 0.0
    %396 = vmatpush1.msra.mxu0 0.0
    %397 = vmatprep.subr.mxu0 0.0
    %398 = vmatpush1.msra.mxu0 0.0
    %399 = vmatprep.subr.mxu0 0.0
    %400 = vmatpush1.msra.mxu0 0.0
    %401 = vmatprep.subr.mxu0 0.0
    %402 = vmatpush1.msra.mxu0 0.0
    %403 = vmatprep.subr.mxu0 0.0
    %404 = vmatpush1.msra.mxu0 0.0
    %405 = vmatprep.subr.mxu0 0.0
    %406 = vmatpush1.msra.mxu0 0.0
    %407 = vmatprep.subr.mxu0 0.0
    %408 = vmatpush1.msra.mxu0 0.0
    %409 = vmatprep.subr.mxu0 0.0
    %410 = vmatpush1.msra.mxu0 0.0
    %411 = vmatprep.subr.mxu0 0.0
    %412 = vmatpush1.msra.mxu0 0.0
    %413 = vmatprep.subr.mxu0 0.0
    %414 = vmatpush1.msra.mxu0 0.0
    %415 = vmatprep.subr.mxu0 0.0
    %416 = vmatpush1.msra.mxu0 0.0
    %417 = vmatprep.subr.mxu0 0.0
    %418 = vmatpush1.msra.mxu0 0.0
    %419 = vmatprep.mubr.f32.mxu0 0.0
    %v420 = vand.u32 %v50, 4294901760
    %421 = vmatmul.mubr.f32.gmra.mrb[0].mxu0 %v420
    %v422 = vpop.f32.mrb[0].mxu0
    %v423 = vadd.f32 %v349, %v422
    %v424 = vpop.f32.mrb[0].mxu0
    %425 = vdwg.mxu0
    %426 = vmatprep.subr.mxu0 0.0
    %v427 = vand.u32 %v40, 4294901760
    %428 = vmatpush1.msra.mxu0 %v427
    %429 = vmatprep.subr.mxu0 0.0
    %430 = vmatpush1.msra.mxu0 0.0
    %431 = vmatprep.subr.mxu0 0.0
    %432 = vmatpush1.msra.mxu0 0.0
    %433 = vmatprep.subr.mxu0 0.0
    %434 = vmatpush1.msra.mxu0 0.0
    %435 = vmatprep.subr.mxu0 0.0
    %436 = vmatpush1.msra.mxu0 0.0
    %437 = vmatprep.subr.mxu0 0.0
    %438 = vmatpush1.msra.mxu0 0.0
    %439 = vmatprep.subr.mxu0 0.0
    %440 = vmatpush1.msra.mxu0 0.0
    %441 = vmatprep.subr.mxu0 0.0
    %442 = vmatpush1.msra.mxu0 0.0
    %443 = vmatprep.subr.mxu0 0.0
    %444 = vmatpush1.msra.mxu0 0.0
    %445 = vmatprep.subr.mxu0 0.0
    %446 = vmatpush1.msra.mxu0 0.0
    %447 = vmatprep.subr.mxu0 0.0
    %448 = vmatpush1.msra.mxu0 0.0
    %449 = vmatprep.subr.mxu0 0.0
    %450 = vmatpush1.msra.mxu0 0.0
    %451 = vmatprep.subr.mxu0 0.0
    %452 = vmatpush1.msra.mxu0 0.0
    %453 = vmatprep.subr.mxu0 0.0
    %454 = vmatpush1.msra.mxu0 0.0
    %455 = vmatprep.subr.mxu0 0.0
    %456 = vmatpush1.msra.mxu0 0.0
    %457 = vmatprep.subr.mxu0 0.0
    %458 = vmatpush1.msra.mxu0 0.0
    %459 = vmatprep.subr.mxu0 0.0
    %460 = vmatpush1.msra.mxu0 0.0
    %461 = vmatprep.subr.mxu0 0.0
    %462 = vmatpush1.msra.mxu0 0.0
    %463 = vmatprep.subr.mxu0 0.0
    %464 = vmatpush1.msra.mxu0 0.0
    %465 = vmatprep.subr.mxu0 0.0
    %466 = vmatpush1.msra.mxu0 0.0
    %467 = vmatprep.subr.mxu0 0.0
    %468 = vmatpush1.msra.mxu0 0.0
    %469 = vmatprep.subr.mxu0 0.0
    %470 = vmatpush1.msra.mxu0 0.0
    %471 = vmatprep.subr.mxu0 0.0
    %472 = vmatpush1.msra.mxu0 0.0
    %473 = vmatprep.subr.mxu0 0.0
    %474 = vmatpush1.msra.mxu0 0.0
    %475 = vmatprep.subr.mxu0 0.0
    %476 = vmatpush1.msra.mxu0 0.0
    %477 = vmatprep.subr.mxu0 0.0
    %478 = vmatpush1.msra.mxu0 0.0
    %479 = vmatprep.subr.mxu0 0.0
    %480 = vmatpush1.msra.mxu0 0.0
    %481 = vmatprep.subr.mxu0 0.0
    %482 = vmatpush1.msra.mxu0 0.0
    %483 = vmatprep.subr.mxu0 0.0
    %484 = vmatpush1.msra.mxu0 0.0
    %485 = vmatprep.subr.mxu0 0.0
    %486 = vmatpush1.msra.mxu0 0.0
    %487 = vmatprep.subr.mxu0 0.0
    %488 = vmatpush1.msra.mxu0 0.0
    %489 = vmatprep.subr.mxu0 0.0
    %490 = vmatpush1.msra.mxu0 0.0
    %491 = vmatprep.mubr.f32.mxu0 0.0
    %v492 = vand.u32 %v50, 4294901760
    %493 = vmatmul.mubr.f32.gmra.mrb[0].mxu0 %v492
    %v494 = vpop.f32.mrb[0].mxu0
    %v495 = vadd.f32 %v423, %v494
    %v496 = vpop.f32.mrb[0].mxu0
    %497 = vdwg.mxu0
    %498 = vst [vmem:[#allocation7] sm:$0xff] %v495
    // Predicated region
    $region22: #{tpu_custom_call.1} parent=1 // pred_check
      _
    $region23: #{tpu_custom_call.1} parent=1 // pred_check_branch
      %500 = sbr.rel (0) target = $region25
    $region24: #{tpu_custom_call.1} parent=1 // pred_region
      %s502 = ssub.s32 128, 128
      %503 = vsyncadd [#allocation4], %s502
      %s505 = sshll.u32 [#allocation7], 4
      %s506 = int_to_ptr.vmem [resolvable:$true] %s505
      %508 = dma.vmem_to_hbm [thread:$0]  %s506, 128, %s3, [#allocation4]
    $region25: #{tpu_custom_call.1} parent=1 // pred_fallthru
      _
    // Predicated region
    $region26: #{tpu_custom_call.1} parent=1 // pred_check
      _
    $region27: #{tpu_custom_call.1} parent=1 // pred_check_branch
      %510 = sbr.rel (0) target = $region29
    $region28: #{tpu_custom_call.1} parent=1 // pred_region
      %511 = dma.done [#allocation4], 128
    $region29: #{tpu_custom_call.1} parent=1 // pred_fallthru
      _
    %512 = vsyncpa [#allocation3], 1
    %513 = vsyncpa [#allocation6], 1
    %514 = vsyncpa [#allocation4], 1

</llo_original>
